<compile_context>
chip_gen: v6e
topology: v6e:2x2x1
jax: 0.10.0
libtpu: 0.0.40
codegen_flags: <defaults>
</compile_context>

<pallas_src>
import numpy as np
import jax
import jax.numpy as jnp
from jax.experimental import pallas as pl
from jax.experimental.pallas import tpu as pltpu

D_MODEL = 32          # config["dmodel"]
EPS = 1e-8            # epsilon clamp from the torch module


def _round_up(n, m):
    return ((n + m - 1) // m) * m


# --------------------------------- kernel -----------------------------------
def duration_kernel(x_ref, w1_ref, b1_ref, w2t_ref, b2_ref, out_ref):
    # x: (Bt, D) rows of the flattened (batch*seq, d_model) encoder output.
    x = x_ref[...]

    # Fused first linears of both heads: (Bt, D) @ (D, 2D), ReLU.
    # (Dropout is identity in eval mode.)
    h = jnp.dot(x, w1_ref[...], preferred_element_type=jnp.float32) + b1_ref[...]
    h = jnp.maximum(h, 0.0)

    # Fused second linears, emitted lane-dense:
    # (2, 2D) contracted with (Bt, 2D) on the 2D axis -> (2, Bt).
    pre = jax.lax.dot_general(w2t_ref[...], h, (((1,), (1,)), ((), ())),
                              preferred_element_type=jnp.float32) + b2_ref[...]

    # Softplus (numerically stable) followed by clamp(min=eps).
    sp = jnp.maximum(pre, 0.0) + jnp.log(1.0 + jnp.exp(-jnp.abs(pre)))
    out_ref[...] = jnp.maximum(sp, EPS)


# -------------------------------- wrapper ------------------------------------
def duration_sampler_forward(encoder_output, params, key):
    B, L, D = encoder_output.shape
    assert D == D_MODEL
    N = B * L
    x = encoder_output.reshape(N, D).astype(jnp.float32)

    # Row block: whole problem in one invocation when small, 256-row blocks
    # otherwise (grid axis is "parallel" so v7x's two TCs can split it).
    Bt = 256 if N >= 256 else _round_up(N, 8)
    Np = _round_up(N, Bt)
    if Np != N:
        x = jnp.pad(x, ((0, Np - N), (0, 0)))

    # Pack the 8 per-head tensors into 4 fused operands.
    w1 = jnp.concatenate([params["conc_w1"], params["rate_w1"]], axis=1)      # (D, 2D)
    b1 = jnp.concatenate([params["conc_b1"], params["rate_b1"]])[None, :]     # (1, 2D)
    w2t = jnp.zeros((2, 2 * D), jnp.float32)
    w2t = w2t.at[0, :D].set(params["conc_w2"][:, 0])
    w2t = w2t.at[1, D:].set(params["rate_w2"][:, 0])                          # (2, 2D)
    b2 = jnp.stack([params["conc_b2"], params["rate_b2"]]).reshape(2, 1)      # (2, 1)

    cr = pl.pallas_call(
        duration_kernel,
        out_shape=jax.ShapeDtypeStruct((2, Np), jnp.float32),
        grid=(Np // Bt,),
        in_specs=[
            pl.BlockSpec((Bt, D), lambda i: (i, 0)),        # activations (blocked rows)
            pl.BlockSpec((D, 2 * D), lambda i: (0, 0)),     # fused W1
            pl.BlockSpec((1, 2 * D), lambda i: (0, 0)),     # fused b1
            pl.BlockSpec((2, 2 * D), lambda i: (0, 0)),     # fused W2^T
            pl.BlockSpec((2, 1), lambda i: (0, 0)),         # fused b2
        ],
        out_specs=pl.BlockSpec((2, Bt), lambda i: (0, i)),  # lane-dense (2, rows)
        compiler_params=pltpu.CompilerParams(dimension_semantics=("parallel",)),
    )(x, w1, b1, w2t, b2)

    conc = cr[0, :N].reshape(B, L, 1)
    rate = cr[1, :N].reshape(B, L, 1)

    # TODO(synk): torch.distributions.Gamma.sample() is a rejection sampler with
    # no clean Pallas equivalent; sample in the wrapper with jax.random.gamma.
    sample = jax.random.gamma(key, conc) / rate
    out = jnp.maximum(sample, 1.0).reshape(B, L)            # clamp(min=1.0) + flatten(1)
    return out, (conc, rate)


# --------------------------- deterministic params ----------------------------
def init_params(key):
    ks = jax.random.split(key, 8)

    def rnd(k, shape, scale=0.1):
        return jax.random.normal(k, shape, jnp.float32) * scale

    return {
        "conc_w1": rnd(ks[0], (D_MODEL, D_MODEL)),
        "conc_b1": rnd(ks[1], (D_MODEL,), 0.02),
        "conc_w2": rnd(ks[2], (D_MODEL, 1)),
        "conc_b2": rnd(ks[3], (1,), 0.02),
        "rate_w1": rnd(ks[4], (D_MODEL, D_MODEL)),
        "rate_b1": rnd(ks[5], (D_MODEL,), 0.02),
        "rate_w2": rnd(ks[6], (D_MODEL, 1)),
        "rate_b2": rnd(ks[7], (1,), 0.02),
    }


# ----------------------------- pure-JAX reference ----------------------------
def reference_conc_rate(x, p):
    h = jax.nn.relu(x @ p["conc_w1"] + p["conc_b1"])
    conc = jnp.maximum(jax.nn.softplus(h @ p["conc_w2"] + p["conc_b2"]), EPS)
    h = jax.nn.relu(x @ p["rate_w1"] + p["rate_b1"])
    rate = jnp.maximum(jax.nn.softplus(h @ p["rate_w2"] + p["rate_b2"]), EPS)
    return conc, rate


# ------------------------------------ main ------------------------------------
if __name__ == "__main__":
    key = jax.random.PRNGKey(0)
    kx, kp, ks = jax.random.split(key, 3)

    B, L = 2, 8
    enc = jax.random.normal(kx, (B, L, D_MODEL), jnp.float32)
    params = init_params(kp)

    out, (conc, rate) = duration_sampler_forward(enc, params, ks)
    out = jax.block_until_ready(out)

    ref_conc, ref_rate = reference_conc_rate(enc, params)
    np.testing.assert_allclose(np.asarray(conc), np.asarray(ref_conc),
                               rtol=2e-3, atol=2e-3)
    np.testing.assert_allclose(np.asarray(rate), np.asarray(ref_rate),
                               rtol=2e-3, atol=2e-3)
    assert out.shape == (B, L)
    assert bool(jnp.all(out >= 1.0)) and bool(jnp.all(jnp.isfinite(out)))

    print("KERNEL_OK")
</pallas_src>

<mosaic_0001>
module attributes {stable_mosaic.version = 11 : i64} {
  func.func @duration_kernel(%arg0: i32, %arg1: memref<16x32xf32, #tpu.memory_space<vmem>>, %arg2: memref<32x64xf32, #tpu.memory_space<vmem>>, %arg3: memref<1x64xf32, #tpu.memory_space<vmem>>, %arg4: memref<2x64xf32, #tpu.memory_space<vmem>>, %arg5: memref<2x1xf32, #tpu.memory_space<vmem>>, %arg6: memref<2x16xf32, #tpu.memory_space<vmem>>) attributes {dimension_semantics = [#tpu.dimension_semantics<parallel>], iteration_bounds = array<i64: 1>, scalar_prefetch = 0 : i64, scratch_operands = 0 : i64, tpu.core_type = #tpu.core_type<tc>, window_params = [{transform_indices = @transform_0, window_bounds = array<i64: 16, 32>}, {pipeline_mode = #tpu.pipeline_mode<synchronous>, transform_indices = @transform_1, window_bounds = array<i64: 32, 64>}, {pipeline_mode = #tpu.pipeline_mode<synchronous>, transform_indices = @transform_2, window_bounds = array<i64: 1, 64>}, {pipeline_mode = #tpu.pipeline_mode<synchronous>, transform_indices = @transform_3, window_bounds = array<i64: 2, 64>}, {pipeline_mode = #tpu.pipeline_mode<synchronous>, transform_indices = @transform_4, window_bounds = array<i64: 2, 1>}, {transform_indices = @transform_5, window_bounds = array<i64: 2, 16>}]} {
    %c0 = arith.constant 0 : index
    %c0_0 = arith.constant 0 : index
    %0 = vector.load %arg1[%c0, %c0_0] : memref<16x32xf32, #tpu.memory_space<vmem>>, vector<16x32xf32>
    %c0_1 = arith.constant 0 : index
    %c0_2 = arith.constant 0 : index
    %1 = vector.load %arg2[%c0_1, %c0_2] : memref<32x64xf32, #tpu.memory_space<vmem>>, vector<32x64xf32>
    %cst = arith.constant dense<0.000000e+00> : vector<16x64xf32>
    %2 = tpu.matmul %0, %1, %cst {dimension_numbers = #tpu.dot_dimension_numbers<[1], [0], [0], [1], [0, 0, 1, 1], [], []>} : vector<16x32xf32>, vector<32x64xf32>, vector<16x64xf32> -> vector<16x64xf32>
    %c0_3 = arith.constant 0 : index
    %c0_4 = arith.constant 0 : index
    %3 = vector.load %arg3[%c0_3, %c0_4] : memref<1x64xf32, #tpu.memory_space<vmem>>, vector<1x64xf32>
    %4 = vector.broadcast %3 : vector<1x64xf32> to vector<16x64xf32>
    %5 = arith.addf %2, %4 : vector<16x64xf32>
    %cst_5 = arith.constant 0.000000e+00 : f32
    %6 = vector.broadcast %cst_5 : f32 to vector<16x64xf32>
    %7 = arith.maximumf %5, %6 : vector<16x64xf32>
    %c0_6 = arith.constant 0 : index
    %c0_7 = arith.constant 0 : index
    %8 = vector.load %arg4[%c0_6, %c0_7] : memref<2x64xf32, #tpu.memory_space<vmem>>, vector<2x64xf32>
    %cst_8 = arith.constant dense<0.000000e+00> : vector<2x16xf32>
    %9 = tpu.matmul %8, %7, %cst_8 {dimension_numbers = #tpu.dot_dimension_numbers<[1], [1], [0], [0], [0, 0, 1, 0], [], []>} : vector<2x64xf32>, vector<16x64xf32>, vector<2x16xf32> -> vector<2x16xf32>
    %c0_9 = arith.constant 0 : index
    %c0_10 = arith.constant 0 : index
    %10 = vector.load %arg5[%c0_9, %c0_10] : memref<2x1xf32, #tpu.memory_space<vmem>>, vector<2x1xf32>
    %11 = vector.broadcast %10 : vector<2x1xf32> to vector<2x16xf32>
    %12 = arith.addf %9, %11 : vector<2x16xf32>
    %cst_11 = arith.constant 0.000000e+00 : f32
    %13 = vector.broadcast %cst_11 : f32 to vector<2x16xf32>
    %14 = arith.maximumf %12, %13 : vector<2x16xf32>
    %15 = math.absf %12 : vector<2x16xf32>
    %cst_12 = arith.constant 0.000000e+00 : f32
    %16 = vector.broadcast %cst_12 : f32 to vector<2x16xf32>
    %17 = arith.subf %16, %15 : vector<2x16xf32>
    %18 = math.exp %17 : vector<2x16xf32>
    %cst_13 = arith.constant 1.000000e+00 : f32
    %19 = vector.broadcast %cst_13 : f32 to vector<2x16xf32>
    %20 = arith.addf %19, %18 : vector<2x16xf32>
    %21 = math.log %20 : vector<2x16xf32>
    %22 = arith.addf %14, %21 : vector<2x16xf32>
    %cst_14 = arith.constant 9.99999993E-9 : f32
    %23 = vector.broadcast %cst_14 : f32 to vector<2x16xf32>
    %24 = arith.maximumf %22, %23 : vector<2x16xf32>
    %c0_15 = arith.constant 0 : index
    %c0_16 = arith.constant 0 : index
    %25 = vector.load %arg6[%c0_15, %c0_16] : memref<2x16xf32, #tpu.memory_space<vmem>>, vector<2x16xf32>
    tpu.vector_store %arg6[%c0_15, %c0_16], %24 {strides = array<i32>} : memref<2x16xf32, #tpu.memory_space<vmem>>, vector<2x16xf32>,
    return
  }
  func.func @transform_0(%arg0: i32) -> (i32, i32) {
    %c0_i32 = arith.constant 0 : i32
    %c0_i32_0 = arith.constant 0 : i32
    return %arg0, %c0_i32 : i32, i32
  }
  func.func @transform_1(%arg0: i32) -> (i32, i32) {
    %c0_i32 = arith.constant 0 : i32
    %c0_i32_0 = arith.constant 0 : i32
    %c0_i32_1 = arith.constant 0 : i32
    return %c0_i32, %c0_i32_0 : i32, i32
  }
  func.func @transform_2(%arg0: i32) -> (i32, i32) {
    %c0_i32 = arith.constant 0 : i32
    %c0_i32_0 = arith.constant 0 : i32
    %c0_i32_1 = arith.constant 0 : i32
    return %c0_i32, %c0_i32_0 : i32, i32
  }
  func.func @transform_3(%arg0: i32) -> (i32, i32) {
    %c0_i32 = arith.constant 0 : i32
    %c0_i32_0 = arith.constant 0 : i32
    %c0_i32_1 = arith.constant 0 : i32
    return %c0_i32, %c0_i32_0 : i32, i32
  }
  func.func @transform_4(%arg0: i32) -> (i32, i32) {
    %c0_i32 = arith.constant 0 : i32
    %c0_i32_0 = arith.constant 0 : i32
    %c0_i32_1 = arith.constant 0 : i32
    return %c0_i32, %c0_i32_0 : i32, i32
  }
  func.func @transform_5(%arg0: i32) -> (i32, i32) {
    %c0_i32 = arith.constant 0 : i32
    %c0_i32_0 = arith.constant 0 : i32
    return %c0_i32, %arg0 : i32, i32
  }
}

</mosaic_0001>

<llo_original>
// kernel: tpu_custom_call.1
$region0: #{tpu_custom_call.1}
  #allocation0 [shape = 'u32[]', space=smem, size = 0x4, offset = 0x4, fixed_abs, tag = 'smem constant byte address 0x4 - core index']
  #allocation1 [shape = 'u32[144,128]{1,0:T(1,128)}', space=vmem, size = 0x12000, scoped, tag = 'internal scratch']
  %s0 = inlined_call_operand.hbm [shape: f32[16,32], index: 0, kind: input, shape index: {}]
  %s1 = inlined_call_operand.hbm [shape: f32[32,64], index: 1, kind: input, shape index: {}]
  %s2 = inlined_call_operand.vmem [shape: f32[1,64], index: 2, kind: input, shape index: {}]
  %s3 = inlined_call_operand.vmem [shape: f32[2,64], index: 3, kind: input, shape index: {}]
  %s4 = inlined_call_operand.vmem [shape: f32[2,1], index: 4, kind: input, shape index: {}]
  %s5 = inlined_call_operand.hbm [shape: f32[2,16], index: 5, kind: output, shape index: {}]
  %s6 = sld [smem:[#allocation0]]
  $region38: #{tpu_custom_call.1} parent=0
    _
  %s8 = ssub.s32 1, %s6
  %s9 = scalar_select 0, %s8, %s6
  $region1: #{tpu_custom_call.1} parent=0
    #allocation2 [shape = 'u8[8192]{0}', space=vmem, size = 0x2000, scoped, tag = 'input window, operand 0, single buffered']
    #allocation3 [shape = 's32[1]{0}', space=sflag, size = 0x4, scoped, tag = 'scoped memory for tpu_custom_call.1']
    #allocation4 [shape = 's32[1]{0}', space=sflag, size = 0x4, scoped, tag = 'scoped memory for tpu_custom_call.1']
    #allocation5 [shape = 'u8[16384]{0}', space=vmem, size = 0x4000, scoped, tag = 'input window, operand 1, single buffered']
    #allocation6 [shape = 's32[1]{0}', space=sflag, size = 0x4, scoped, tag = 'scoped memory for tpu_custom_call.1']
    #allocation7 [shape = 'u8[1024]{0}', space=vmem, size = 0x400, scoped, tag = 'output window, operand 0, single buffered']
    %10 = vsyncpa [#allocation3], 0
    %11 = vsyncpa [#allocation6], 0
    %12 = vsyncpa [#allocation4], 0
    // Predicated region
    $region2: #{tpu_custom_call.1} parent=1 // pred_check
      _
    $region3: #{tpu_custom_call.1} parent=1 // pred_check_branch
      %14 = sbr.rel (0) target = $region5
    $region4: #{tpu_custom_call.1} parent=1 // pred_region
      %s16 = ssub.s32 256, 256
      %17 = vsyncadd [#allocation3], %s16
      %s18 = sshll.u32 [#allocation2], 4
      %s19 = int_to_ptr.vmem [resolvable:$true] %s18
      %24 = dma.hbm_to_vmem [thread:$0]  %s0, 256, %s19, [#allocation3], 128, 128, 8
    $region5: #{tpu_custom_call.1} parent=1 // pred_fallthru
      _
    // Predicated region
    $region6: #{tpu_custom_call.1} parent=1 // pred_check
      _
    $region7: #{tpu_custom_call.1} parent=1 // pred_check_branch
      %26 = sbr.rel (0) target = $region9
    $region8: #{tpu_custom_call.1} parent=1 // pred_region
      %s28 = ssub.s32 512, 512
      %29 = vsyncadd [#allocation6], %s28
      %s30 = sshll.u32 [#allocation5], 4
      %s31 = int_to_ptr.vmem [resolvable:$true] %s30
      %36 = dma.hbm_to_vmem [thread:$0]  %s1, 512, %s31, [#allocation6], 128, 128, 8
    $region9: #{tpu_custom_call.1} parent=1 // pred_fallthru
      _
    // Predicated region
    $region10: #{tpu_custom_call.1} parent=1 // pred_check
      _
    $region11: #{tpu_custom_call.1} parent=1 // pred_check_branch
      %38 = sbr.rel (0) target = $region13
    $region12: #{tpu_custom_call.1} parent=1 // pred_region
      _
    $region13: #{tpu_custom_call.1} parent=1 // pred_fallthru
      _
    // Predicated region
    $region14: #{tpu_custom_call.1} parent=1 // pred_check
      _
    $region15: #{tpu_custom_call.1} parent=1 // pred_check_branch
      %40 = sbr.rel (0) target = $region17
    $region16: #{tpu_custom_call.1} parent=1 // pred_region
      _
    $region17: #{tpu_custom_call.1} parent=1 // pred_fallthru
      _
    // Predicated region
    $region18: #{tpu_custom_call.1} parent=1 // pred_check
      _
    $region19: #{tpu_custom_call.1} parent=1 // pred_check_branch
      %42 = sbr.rel (0) target = $region21
    $region20: #{tpu_custom_call.1} parent=1 // pred_region
      _
    $region21: #{tpu_custom_call.1} parent=1 // pred_fallthru
      _
    // Predicated region
    $region22: #{tpu_custom_call.1} parent=1 // pred_check
      _
    $region23: #{tpu_custom_call.1} parent=1 // pred_check_branch
      %44 = sbr.rel (0) target = $region25
    $region24: #{tpu_custom_call.1} parent=1 // pred_region
      %45 = dma.done [#allocation3], 256
    $region25: #{tpu_custom_call.1} parent=1 // pred_fallthru
      _
    // Predicated region
    $region26: #{tpu_custom_call.1} parent=1 // pred_check
      _
    $region27: #{tpu_custom_call.1} parent=1 // pred_check_branch
      %47 = sbr.rel (0) target = $region29
    $region28: #{tpu_custom_call.1} parent=1 // pred_region
      %48 = dma.done [#allocation6], 512
    $region29: #{tpu_custom_call.1} parent=1 // pred_fallthru
      _
    %v49 = vld [vmem:[#allocation2] sm:$0xff]
    %v50 = vld [vmem:[#allocation2 + $0x8] sm:$0xff]
    %v51 = vld [vmem:[#allocation5] sm:$0xff]
    %v52 = vld [vmem:[#allocation5 + $0x8] sm:$0xff]
    %v53 = vld [vmem:[#allocation5 + $0x10] sm:$0xff]
    %v54 = vld [vmem:[#allocation5 + $0x18] sm:$0xff]
    %v55 = vld [vmem:[%s2] sm:$0x1]
    %v57 = vlaneseq
    %v58 = vshrl.u32 %v57, 7
    %v59 = vsub.s32 0, %v58
    %v60 = vrot.slane %v55, %v59
    %vm62 = vcmask 261120
    %v64 = vsel %vm62, %v49, 0
    %v67 = vsel %vm62, %v50, 0
    %69 = vmatprep.subr.mxu0 0.0
    %70 = vmatpush1.msra.mxu0 0.0
    %71 = vmatprep.subr.mxu0 0.0
    %72 = vmatpush1.msra.mxu0 0.0
    %73 = vmatprep.subr.mxu0 0.0
    %74 = vmatpush1.msra.mxu0 0.0
    %75 = vmatprep.subr.mxu0 0.0
    %76 = vmatpush1.msra.mxu0 0.0
    %77 = vmatprep.subr.mxu0 0.0
    %78 = vmatpush1.msra.mxu0 0.0
    %79 = vmatprep.subr.mxu0 0.0
    %80 = vmatpush1.msra.mxu0 0.0
    %81 = vmatprep.subr.mxu0 0.0
    %82 = vmatpush1.msra.mxu0 0.0
    %83 = vmatprep.subr.mxu0 0.0
    %84 = vmatpush1.msra.mxu0 0.0
    %85 = vmatprep.subr.mxu0 0.0
    %86 = vmatpush1.msra.mxu0 0.0
    %87 = vmatprep.subr.mxu0 0.0
    %88 = vmatpush1.msra.mxu0 0.0
    %89 = vmatprep.subr.mxu0 0.0
    %90 = vmatpush1.msra.mxu0 0.0
    %91 = vmatprep.subr.mxu0 0.0
    %92 = vmatpush1.msra.mxu0 0.0
    %93 = vmatprep.subr.mxu0 0.0
    %94 = vmatpush1.msra.mxu0 %v54
    %95 = vmatprep.subr.mxu0 0.0
    %96 = vmatpush1.msra.mxu0 %v53
    %97 = vmatprep.subr.mxu0 0.0
    %98 = vmatpush1.msra.mxu0 %v52
    %99 = vmatprep.subr.mxu0 0.0
    %100 = vmatpush1.msra.mxu0 %v51
    %101 = vmatprep.subr.mxu0 0.0
    %102 = vmatpush2.msra.mxu0 0.0
    %103 = vmatprep.subr.mxu0 0.0
    %104 = vmatpush2.msra.mxu0 0.0
    %105 = vmatprep.subr.mxu0 0.0
    %106 = vmatpush2.msra.mxu0 0.0
    %107 = vmatprep.subr.mxu0 0.0
    %108 = vmatpush2.msra.mxu0 0.0
    %109 = vmatprep.subr.mxu0 0.0
    %110 = vmatpush2.msra.mxu0 0.0
    %111 = vmatprep.subr.mxu0 0.0
    %112 = vmatpush2.msra.mxu0 0.0
    %113 = vmatprep.subr.mxu0 0.0
    %114 = vmatpush2.msra.mxu0 0.0
    %115 = vmatprep.subr.mxu0 0.0
    %116 = vmatpush2.msra.mxu0 0.0
    %117 = vmatprep.subr.mxu0 0.0
    %118 = vmatpush2.msra.mxu0 0.0
    %119 = vmatprep.subr.mxu0 0.0
    %120 = vmatpush2.msra.mxu0 0.0
    %121 = vmatprep.subr.mxu0 0.0
    %122 = vmatpush2.msra.mxu0 0.0
    %123 = vmatprep.subr.mxu0 0.0
    %124 = vmatpush2.msra.mxu0 0.0
    %125 = vmatprep.subr.mxu0 0.0
    %126 = vmatpush2.msra.mxu0 0.0
    %127 = vmatprep.subr.mxu0 0.0
    %128 = vmatpush2.msra.mxu0 0.0
    %129 = vmatprep.subr.mxu0 0.0
    %130 = vmatpush2.msra.mxu0 0.0
    %131 = vmatprep.subr.mxu0 0.0
    %132 = vmatpush2.msra.mxu0 0.0
    %133 = vmatprep.mubr.f32.mxu0 0.0
    %134 = vmatmul.mubr.f32.gmra.mxu0 %v64
    %v135 = vpop.f32.mrf.mxu0
    %v136 = vadd.f32 %v60, %v135
    %v137 = vpop.f32.mrf.mxu0
    %138 = vmatprep.mubr.f32.mxu0 0.0
    %139 = vmatmul.mubr.f32.gmra.mxu0 %v67
    %v140 = vpop.f32.mrf.mxu0
    %v141 = vadd.f32 %v60, %v140
    %v142 = vpop.f32.mrf.mxu0
    %143 = vdwg.mxu0
    %v144 = vmax.f32 %v136, 0.0
    %v145 = vmax.f32 %v141, 0.0
    %v146 = vld [vmem:[%s3] sm:$0x3]
    %v147 = vld [vmem:[%s4] sm:$0x3]
    %149 = vset.pattern.permute.xlu0 0
    %150 = vperm.xlu0 %149, %v147
    %v151 = vpop.permute.xlu0 %150
    %vm153 = vcmask 523264
    %v155 = vsel %vm153, %v146, 0
    %v158 = vsel %vm153, %v144, 0
    %v161 = vsel %vm153, %v145, 0
    %163 = vmatprep.subr.mxu0 0.0
    %164 = vmatpush1.xpose.msra.mxu0 0.0
    %165 = vmatprep.subr.mxu0 0.0
    %166 = vmatpush1.xpose.msra.mxu0 0.0
    %167 = vmatprep.subr.mxu0 0.0
    %168 = vmatpush1.xpose.msra.mxu0 0.0
    %169 = vmatprep.subr.mxu0 0.0
    %170 = vmatpush1.xpose.msra.mxu0 0.0
    %171 = vmatprep.subr.mxu0 0.0
    %172 = vmatpush1.xpose.msra.mxu0 0.0
    %173 = vmatprep.subr.mxu0 0.0
    %174 = vmatpush1.xpose.msra.mxu0 0.0
    %175 = vmatprep.subr.mxu0 0.0
    %176 = vmatpush1.xpose.msra.mxu0 0.0
    %177 = vmatprep.subr.mxu0 0.0
    %178 = vmatpush1.xpose.msra.mxu0 0.0
    %179 = vmatprep.subr.mxu0 0.0
    %180 = vmatpush1.xpose.msra.mxu0 0.0
    %181 = vmatprep.subr.mxu0 0.0
    %182 = vmatpush1.xpose.msra.mxu0 0.0
    %183 = vmatprep.subr.mxu0 0.0
    %184 = vmatpush1.xpose.msra.mxu0 0.0
    %185 = vmatprep.subr.mxu0 0.0
    %186 = vmatpush1.xpose.msra.mxu0 0.0
    %187 = vmatprep.subr.mxu0 0.0
    %188 = vmatpush1.xpose.msra.mxu0 0.0
    %189 = vmatprep.subr.mxu0 0.0
    %190 = vmatpush1.xpose.msra.mxu0 0.0
    %191 = vmatprep.subr.mxu0 0.0
    %192 = vmatpush1.xpose.msra.mxu0 %v161
    %193 = vmatprep.subr.mxu0 0.0
    %194 = vmatpush1.xpose.msra.mxu0 %v158
    %195 = vmatprep.subr.mxu0 0.0
    %196 = vmatpush2.xpose.msra.mxu0 0.0
    %197 = vmatprep.subr.mxu0 0.0
    %198 = vmatpush2.xpose.msra.mxu0 0.0
    %199 = vmatprep.subr.mxu0 0.0
    %200 = vmatpush2.xpose.msra.mxu0 0.0
    %201 = vmatprep.subr.mxu0 0.0
    %202 = vmatpush2.xpose.msra.mxu0 0.0
    %203 = vmatprep.subr.mxu0 0.0
    %204 = vmatpush2.xpose.msra.mxu0 0.0
    %205 = vmatprep.subr.mxu0 0.0
    %206 = vmatpush2.xpose.msra.mxu0 0.0
    %207 = vmatprep.subr.mxu0 0.0
    %208 = vmatpush2.xpose.msra.mxu0 0.0
    %209 = vmatprep.subr.mxu0 0.0
    %210 = vmatpush2.xpose.msra.mxu0 0.0
    %211 = vmatprep.subr.mxu0 0.0
    %212 = vmatpush2.xpose.msra.mxu0 0.0
    %213 = vmatprep.subr.mxu0 0.0
    %214 = vmatpush2.xpose.msra.mxu0 0.0
    %215 = vmatprep.subr.mxu0 0.0
    %216 = vmatpush2.xpose.msra.mxu0 0.0
    %217 = vmatprep.subr.mxu0 0.0
    %218 = vmatpush2.xpose.msra.mxu0 0.0
    %219 = vmatprep.subr.mxu0 0.0
    %220 = vmatpush2.xpose.msra.mxu0 0.0
    %221 = vmatprep.subr.mxu0 0.0
    %222 = vmatpush2.xpose.msra.mxu0 0.0
    %223 = vmatprep.subr.mxu0 0.0
    %224 = vmatpush2.xpose.msra.mxu0 0.0
    %225 = vmatprep.subr.mxu0 0.0
    %226 = vmatpush2.xpose.msra.mxu0 0.0
    %227 = vmatprep.mubr.f32.mxu0 0.0
    %228 = vmatmul.mubr.f32.gmra.mxu0 %v155
    %v229 = vpop.f32.mrf.mxu0
    %v230 = vadd.f32 %v151, %v229
    %v231 = vpop.f32.mrf.mxu0
    %232 = vdwg.mxu0
    %v233 = vmax.f32 %v230, 0.0
    %v234 = vand.u32 2147483647, %v230
    %v235 = vsub.f32 0.0, %v234
    %v236 = vmul.f32 %v235, 1.442695
    %v237 = vpow.pop %v236
    %v238 = vadd.f32 %v237, 1.0
    %v239 = vlog2.pop %v238
    %v240 = vmul.f32 %v239, 0.6931472
    %v241 = vadd.f32 %v233, %v240
    %v242 = vmax.f32 %v241, 1e-08
    %vm243 = vcmask 123904
    %244 = vst.msk [vmem:[#allocation7] sm:$0x3] %vm243, %v242
    // Predicated region
    $region30: #{tpu_custom_call.1} parent=1 // pred_check
      _
    $region31: #{tpu_custom_call.1} parent=1 // pred_check_branch
      %246 = sbr.rel (0) target = $region33
    $region32: #{tpu_custom_call.1} parent=1 // pred_region
      %s248 = ssub.s32 32, 32
      %249 = vsyncadd [#allocation4], %s248
      %s251 = sshll.u32 [#allocation7], 4
      %s252 = int_to_ptr.vmem [resolvable:$true] %s251
      %254 = dma.vmem_to_hbm [thread:$0]  %s252, 32, %s5, [#allocation4]
    $region33: #{tpu_custom_call.1} parent=1 // pred_fallthru
      _
    // Predicated region
    $region34: #{tpu_custom_call.1} parent=1 // pred_check
      _
    $region35: #{tpu_custom_call.1} parent=1 // pred_check_branch
      %256 = sbr.rel (0) target = $region37
    $region36: #{tpu_custom_call.1} parent=1 // pred_region
      %257 = dma.done [#allocation4], 32
    $region37: #{tpu_custom_call.1} parent=1 // pred_fallthru
      _
    %258 = vsyncpa [#allocation3], 1
    %259 = vsyncpa [#allocation6], 1
    %260 = vsyncpa [#allocation4], 1

</llo_original>
